<compile_context>
chip_gen: v7x
topology: tpu7x:2x2x1
jax: 0.10.0
libtpu: 0.0.40
codegen_flags: <defaults>
</compile_context>

<pallas_src>
import functools

import jax
import jax.numpy as jnp
from jax.experimental import pallas as pl
from jax.experimental.pallas import tpu as pltpu


# ---------------------------------------------------------------------------
# kernel bodies
# ---------------------------------------------------------------------------
def _se_math(x, w1t, b1, w2, b2):
    """SE gate for one (C, HW) slab.

    x   : (C, HW) f32
    w1t : (C, Cr)  = W1.T        b1 : (1, Cr)
    w2  : (C, Cr)  (PyTorch (out=C, in=Cr))   b2 : (C, 1)
    """
    # squeeze: global average pool (lane-axis reduce) -> one value per channel
    mean = jnp.mean(x, axis=-1, keepdims=True)                  # (C, 1)
    # excitation MLP kept off the MXU (tiny K/N): VPU mul + XLU reduce
    h = jnp.sum(w1t * mean, axis=0, keepdims=True) + b1         # (1, Cr)
    h = jnp.maximum(h, 0.0)
    s = jnp.sum(w2 * h, axis=-1, keepdims=True) + b2            # (C, 1)
    s = jax.nn.sigmoid(s)
    # scale: per-channel gate broadcasts over the HW lane axis
    return x * s


def _se_kernel_per_sample(_src_ref, grp_ref, x_ref, w1t_ref, b1_ref, w2_ref,
                          b2_ref, o_ref):
    """One gathered sample per grid step (large-slab / streaming path).

    x_ref : (1, C, HW)  sample gathered via src_idx[i] in the index_map.
    w*_ref: full stacked (2, ...) weight tensors, VMEM-resident; the group is
            selected here with the scalar-prefetched group id.
    o_ref : (1, C, HW)  written at its concatenated position i.
    """
    g = grp_ref[pl.program_id(0)]
    x = x_ref[0]
    o_ref[0] = _se_math(x, w1t_ref[g], b1_ref[g], w2_ref[g],
                        b2_ref[g]).astype(o_ref.dtype)


def _se_kernel_resident(src_ref, grp_ref, x_ref, w1t_ref, b1_ref, w2_ref,
                        b2_ref, o_ref):
    """Several samples per grid step with the whole x resident in VMEM
    (small-feature-map path): gather + weight-group select are dynamic
    VMEM indexes, no per-sample DMA overhead."""
    i = pl.program_id(0)
    tb = o_ref.shape[0]                      # static, small (<= 8)
    for t in range(tb):
        idx = i * tb + t
        g = grp_ref[idx]
        x = x_ref[src_ref[idx]]              # dynamic batch gather from VMEM
        o_ref[t] = _se_math(x, w1t_ref[g], b1_ref[g], w2_ref[g],
                            b2_ref[g]).astype(o_ref.dtype)


# ---------------------------------------------------------------------------
# wrapper
# ---------------------------------------------------------------------------
def _physical_vmem_bytes():
    try:
        return int(pltpu.get_tpu_info().vmem_capacity_bytes)
    except Exception:
        return 64 << 20        # conservative fallback (v7x per-TensorCore)


def _pick_samples_per_block(n_out, cap=8):
    divisors = [t for t in range(1, min(cap, n_out) + 1) if n_out % t == 0]
    # keep at least 2 grid steps so the v7x megacore can split the batch axis
    multi = [t for t in divisors if n_out // t >= 2]
    return max(multi) if multi else max(divisors)


def dense_3d_dt_forward(spatial_features, split_tag_s1, split_tag_s2,
                        params_s1, params_s2, force_path=None):
    """Fused DENSE_3D_DT forward.

    spatial_features : (B, C, H, W) float32
    split_tag_s{1,2} : int32 index arrays selecting the samples of each source
    params_s{1,2}    : (w1, b1, w2, b2) in PyTorch nn.Linear layout:
                       w1 (Cr, C), b1 (Cr,), w2 (C, Cr), b2 (C,)
    force_path       : None (auto) | "resident" | "per_sample"  (static)
    Returns concat([SE_s1(x[s1]), SE_s2(x[s2])], axis=0) as (n_out, C, H, W).
    """
    B, C, H, W = spatial_features.shape
    HW = H * W
    itemsize = spatial_features.dtype.itemsize

    # channel-major: contiguous (free) reshape of NCHW -- no transpose.
    x = spatial_features.reshape(B, C, HW)

    # per-output-sample gather index + weight-group id (scalar prefetch).
    src_idx = jnp.concatenate([split_tag_s1, split_tag_s2]).astype(jnp.int32)
    grp_id = jnp.concatenate(
        [jnp.zeros_like(split_tag_s1), jnp.ones_like(split_tag_s2)]
    ).astype(jnp.int32)
    n_out = src_idx.shape[0]

    # stack both SEBlocks' params along a leading group axis of size 2.
    def _prep(p):
        w1, b1, w2, b2 = p
        cr = w1.shape[0]
        return (jnp.transpose(w1),       # (C, Cr)
                b1.reshape(1, cr),       # (1, Cr)
                w2,                      # (C, Cr)
                b2.reshape(C, 1))        # (C, 1)

    p1, p2 = _prep(params_s1), _prep(params_s2)
    w1t = jnp.stack([p1[0], p2[0]])      # (2, C, Cr)
    b1s = jnp.stack([p1[1], p2[1]])      # (2, 1, Cr)
    w2s = jnp.stack([p1[2], p2[2]])      # (2, C, Cr)
    b2s = jnp.stack([p1[3], p2[3]])      # (2, C, 1)
    Cr = w1t.shape[-1]

    # weights: full-array blocks with constant index_maps -> DMA'd once, kept
    # resident in VMEM across the whole grid (no per-step DMA / double-buffer).
    weight_specs = [
        pl.BlockSpec((2, C, Cr), lambda i, src, grp: (0, 0, 0)),
        pl.BlockSpec((2, 1, Cr), lambda i, src, grp: (0, 0, 0)),
        pl.BlockSpec((2, C, Cr), lambda i, src, grp: (0, 0, 0)),
        pl.BlockSpec((2, C, 1), lambda i, src, grp: (0, 0, 0)),
    ]
    weight_pad_bytes = 1 << 20           # generous bound on padded weight tiles

    slab_bytes = C * HW * itemsize
    x_bytes = B * C * HW * itemsize
    tb = _pick_samples_per_block(n_out)

    resident_needed = 2 * x_bytes + 2 * tb * slab_bytes + weight_pad_bytes
    per_sample_needed = 4 * slab_bytes + weight_pad_bytes

    phys_vmem = _physical_vmem_bytes()
    if force_path is None:
        use_resident = resident_needed <= min(28 << 20, phys_vmem // 2)
    else:
        use_resident = (force_path == "resident")

    if use_resident:
        # small-feature-map path: whole x resident, tb samples per grid step.
        kernel = _se_kernel_resident
        grid = (n_out // tb,)
        x_spec = pl.BlockSpec((B, C, HW), lambda i, src, grp: (0, 0, 0))
        out_spec = pl.BlockSpec((tb, C, HW), lambda i, src, grp: (i, 0, 0))
        needed = resident_needed
    else:
        # streaming path: one gathered (C, HW) slab per grid step.
        # TODO(synk): for huge batches of small slabs that do not fit VMEM,
        # gather several samples per step with manual make_async_copy instead
        # of one slab per grid step (amortizes the ~0.35us/step overhead).
        kernel = _se_kernel_per_sample
        grid = (n_out,)
        x_spec = pl.BlockSpec((1, C, HW), lambda i, src, grp: (src[i], 0, 0))
        out_spec = pl.BlockSpec((1, C, HW), lambda i, src, grp: (i, 0, 0))
        needed = per_sample_needed

    # Always set the scoped-VMEM limit (default is only 16 MiB on v5e /
    # 32 MiB on v6e+v7x) and clamp just under the physical per-core VMEM.
    # TODO(synk): if `needed` ever exceeds physical VMEM (slab > ~13.5 MiB on
    # v7x), add an HW-tiled two-pass (mean, then scale) fallback.
    vmem_limit = max(int(needed * 1.25) + (2 << 20), 16 << 20)
    vmem_limit = min(vmem_limit, phys_vmem - (2 << 20))

    out = pl.pallas_call(
        kernel,
        out_shape=jax.ShapeDtypeStruct((n_out, C, HW), x.dtype),
        grid_spec=pltpu.PrefetchScalarGridSpec(
            num_scalar_prefetch=2,
            grid=grid,
            in_specs=[x_spec] + weight_specs,
            # write directly into the concatenated position -> no concatenate
            out_specs=out_spec,
        ),
        compiler_params=pltpu.CompilerParams(
            dimension_semantics=("parallel",),
            vmem_limit_bytes=vmem_limit,
        ),
    )(src_idx, grp_id, x, w1t, b1s, w2s, b2s)

    # NOTE: no input_output_aliases -- the kernel permutes samples (gather by
    # src_idx), so in-place writes over the input would race with later reads.
    # NOTE: bf16 I/O would ~halve HBM-bound wall time but changes the module's
    # f32 semantics, so it is intentionally not applied here.
    return out.reshape(n_out, C, H, W)


# ---------------- pure-JAX reference (for correctness check) ----------------
def _se_ref(x, w1, b1, w2, b2):
    # PyTorch nn.Linear layout: y = x @ W.T + b
    m = jnp.mean(x, axis=(2, 3))                         # (B, C)
    h = jnp.maximum(m @ w1.T + b1, 0.0)                  # (B, Cr)
    s = jax.nn.sigmoid(h @ w2.T + b2)                    # (B, C)
    return x * s[:, :, None, None]


if __name__ == "__main__":
    key = jax.random.PRNGKey(0)
    B, C, H, W = 4, 64, 16, 16     # INPUT_CONV_CHANNEL = 64
    r = 16
    Cr = C // r

    keys = jax.random.split(key, 3)
    x = jax.random.normal(keys[0], (B, C, H, W), jnp.float32)

    def init_se(k):
        k1, k2, k3, k4 = jax.random.split(k, 4)
        w1 = 0.1 * jax.random.normal(k1, (Cr, C), jnp.float32)  # Linear(C,Cr).weight
        b1 = 0.1 * jax.random.normal(k2, (Cr,), jnp.float32)
        w2 = 0.1 * jax.random.normal(k3, (C, Cr), jnp.float32)  # Linear(Cr,C).weight
        b2 = 0.1 * jax.random.normal(k4, (C,), jnp.float32)
        return w1, b1, w2, b2

    params_s1 = init_se(keys[1])
    params_s2 = init_se(keys[2])

    # interleaved split tags (as common_utils.split_batch_dict would produce)
    split_tag_s1 = jnp.array([0, 2], dtype=jnp.int32)
    split_tag_s2 = jnp.array([1, 3], dtype=jnp.int32)

    ref = jnp.concatenate(
        [_se_ref(x[split_tag_s1], *params_s1),
         _se_ref(x[split_tag_s2], *params_s2)], axis=0)

    # auto path: at this small size it picks the VMEM-resident multi-sample path
    fwd = jax.jit(dense_3d_dt_forward)
    out = jax.block_until_ready(
        fwd(x, split_tag_s1, split_tag_s2, params_s1, params_s2))
    assert out.shape == (B, C, H, W)
    assert jnp.allclose(out, ref, atol=1e-5, rtol=1e-5), "mismatch (resident)"

    # also exercise the large-slab streaming path (per-sample gather)
    fwd_ps = jax.jit(functools.partial(dense_3d_dt_forward,
                                       force_path="per_sample"))
    out_ps = jax.block_until_ready(
        fwd_ps(x, split_tag_s1, split_tag_s2, params_s1, params_s2))
    assert jnp.allclose(out_ps, ref, atol=1e-5, rtol=1e-5), "mismatch (per_sample)"

    print("KERNEL_OK")
</pallas_src>

<mosaic_0001>
module attributes {stable_mosaic.version = 11 : i64} {
  func.func @_se_kernel_resident(%arg0: i32, %arg1: memref<4xi32, #tpu.memory_space<smem>>, %arg2: memref<4xi32, #tpu.memory_space<smem>>, %arg3: memref<4x64x256xf32, #tpu.memory_space<vmem>>, %arg4: memref<2x64x4xf32, #tpu.memory_space<vmem>>, %arg5: memref<2x1x4xf32, #tpu.memory_space<vmem>>, %arg6: memref<2x64x4xf32, #tpu.memory_space<vmem>>, %arg7: memref<2x64x1xf32, #tpu.memory_space<vmem>>, %arg8: memref<2x64x256xf32, #tpu.memory_space<vmem>>) attributes {dimension_semantics = [#tpu.dimension_semantics<parallel>], iteration_bounds = array<i64: 2>, scalar_prefetch = 2 : i64, scratch_operands = 0 : i64, tpu.core_type = #tpu.core_type<tc>, window_params = [{pipeline_mode = #tpu.pipeline_mode<synchronous>, transform_indices = @transform_0, window_bounds = array<i64: 4, 64, 256>}, {pipeline_mode = #tpu.pipeline_mode<synchronous>, transform_indices = @transform_1, window_bounds = array<i64: 2, 64, 4>}, {pipeline_mode = #tpu.pipeline_mode<synchronous>, transform_indices = @transform_2, window_bounds = array<i64: 2, 1, 4>}, {pipeline_mode = #tpu.pipeline_mode<synchronous>, transform_indices = @transform_3, window_bounds = array<i64: 2, 64, 4>}, {pipeline_mode = #tpu.pipeline_mode<synchronous>, transform_indices = @transform_4, window_bounds = array<i64: 2, 64, 1>}, {transform_indices = @transform_5, window_bounds = array<i64: 2, 64, 256>}]} {
    %c2_i32 = arith.constant 2 : i32
    %0 = arith.muli %arg0, %c2_i32 : i32
    %c0_i32 = arith.constant 0 : i32
    %1 = arith.addi %0, %c0_i32 : i32
    %2 = arith.index_cast %1 : i32 to index
    %3 = memref.load %arg2[%2] : memref<4xi32, #tpu.memory_space<smem>>
    %4 = arith.index_cast %1 : i32 to index
    %5 = memref.load %arg1[%4] : memref<4xi32, #tpu.memory_space<smem>>
    %6 = arith.index_cast %5 : i32 to index
    %c0 = arith.constant 0 : index
    %c0_0 = arith.constant 0 : index
    %7 = vector.load %arg3[%6, %c0, %c0_0] : memref<4x64x256xf32, #tpu.memory_space<vmem>>, vector<1x64x256xf32>
    %8 = vector.shape_cast %7 : vector<1x64x256xf32> to vector<64x256xf32>
    %9 = arith.index_cast %3 : i32 to index
    %c0_1 = arith.constant 0 : index
    %c0_2 = arith.constant 0 : index
    %10 = vector.load %arg4[%9, %c0_1, %c0_2] : memref<2x64x4xf32, #tpu.memory_space<vmem>>, vector<1x64x4xf32>
    %11 = vector.shape_cast %10 : vector<1x64x4xf32> to vector<64x4xf32>
    %12 = arith.index_cast %3 : i32 to index
    %c0_3 = arith.constant 0 : index
    %c0_4 = arith.constant 0 : index
    %13 = vector.load %arg5[%12, %c0_3, %c0_4] : memref<2x1x4xf32, #tpu.memory_space<vmem>>, vector<1x1x4xf32>
    %14 = vector.shape_cast %13 : vector<1x1x4xf32> to vector<1x4xf32>
    %15 = arith.index_cast %3 : i32 to index
    %c0_5 = arith.constant 0 : index
    %c0_6 = arith.constant 0 : index
    %16 = vector.load %arg6[%15, %c0_5, %c0_6] : memref<2x64x4xf32, #tpu.memory_space<vmem>>, vector<1x64x4xf32>
    %17 = vector.shape_cast %16 : vector<1x64x4xf32> to vector<64x4xf32>
    %18 = arith.index_cast %3 : i32 to index
    %c0_7 = arith.constant 0 : index
    %c0_8 = arith.constant 0 : index
    %19 = vector.load %arg7[%18, %c0_7, %c0_8] : memref<2x64x1xf32, #tpu.memory_space<vmem>>, vector<1x64x1xf32>
    %20 = vector.shape_cast %19 : vector<1x64x1xf32> to vector<64x1xf32>
    %cst = arith.constant dense<0.000000e+00> : vector<64xf32>
    %21 = vector.multi_reduction <add>, %8, %cst [1] : vector<64x256xf32> to vector<64xf32>
    %22 = vector.shape_cast %21 : vector<64xf32> to vector<64x1xf32>
    %cst_9 = arith.constant 2.560000e+02 : f32
    %23 = vector.broadcast %cst_9 : f32 to vector<64x1xf32>
    %24 = arith.divf %22, %23 : vector<64x1xf32>
    %25 = vector.broadcast %24 : vector<64x1xf32> to vector<64x4xf32>
    %26 = arith.mulf %11, %25 : vector<64x4xf32>
    %cst_10 = arith.constant dense<0.000000e+00> : vector<4xf32>
    %27 = vector.multi_reduction <add>, %26, %cst_10 [0] : vector<64x4xf32> to vector<4xf32>
    %28 = vector.shape_cast %27 : vector<4xf32> to vector<1x4xf32>
    %29 = arith.addf %28, %14 : vector<1x4xf32>
    %cst_11 = arith.constant 0.000000e+00 : f32
    %30 = vector.broadcast %cst_11 : f32 to vector<1x4xf32>
    %31 = arith.maximumf %29, %30 : vector<1x4xf32>
    %32 = vector.broadcast %31 : vector<1x4xf32> to vector<64x4xf32>
    %33 = arith.mulf %17, %32 : vector<64x4xf32>
    %cst_12 = arith.constant dense<0.000000e+00> : vector<64xf32>
    %34 = vector.multi_reduction <add>, %33, %cst_12 [1] : vector<64x4xf32> to vector<64xf32>
    %35 = vector.shape_cast %34 : vector<64xf32> to vector<64x1xf32>
    %36 = arith.addf %35, %20 : vector<64x1xf32>
    %37 = arith.negf %36 : vector<64x1xf32>
    %38 = math.exp %37 : vector<64x1xf32>
    %cst_13 = arith.constant 1.000000e+00 : f32
    %39 = vector.broadcast %cst_13 : f32 to vector<64x1xf32>
    %40 = arith.addf %39, %38 : vector<64x1xf32>
    %41 = arith.divf %39, %40 : vector<64x1xf32>
    %42 = vector.broadcast %41 : vector<64x1xf32> to vector<64x256xf32>
    %43 = arith.mulf %8, %42 : vector<64x256xf32>
    %c0_14 = arith.constant 0 : index
    %c0_15 = arith.constant 0 : index
    %c0_16 = arith.constant 0 : index
    %44 = vector.load %arg8[%c0_14, %c0_15, %c0_16] : memref<2x64x256xf32, #tpu.memory_space<vmem>>, vector<1x64x256xf32>
    %45 = vector.shape_cast %44 : vector<1x64x256xf32> to vector<64x256xf32>
    %46 = vector.shape_cast %43 : vector<64x256xf32> to vector<1x64x256xf32>
    tpu.vector_store %arg8[%c0_14, %c0_15, %c0_16], %46 {strides = array<i32>} : memref<2x64x256xf32, #tpu.memory_space<vmem>>, vector<1x64x256xf32>,
    %c2_i32_17 = arith.constant 2 : i32
    %47 = arith.muli %arg0, %c2_i32_17 : i32
    %c1_i32 = arith.constant 1 : i32
    %48 = arith.addi %47, %c1_i32 : i32
    %49 = arith.index_cast %48 : i32 to index
    %50 = memref.load %arg2[%49] : memref<4xi32, #tpu.memory_space<smem>>
    %51 = arith.index_cast %48 : i32 to index
    %52 = memref.load %arg1[%51] : memref<4xi32, #tpu.memory_space<smem>>
    %53 = arith.index_cast %52 : i32 to index
    %c0_18 = arith.constant 0 : index
    %c0_19 = arith.constant 0 : index
    %54 = vector.load %arg3[%53, %c0_18, %c0_19] : memref<4x64x256xf32, #tpu.memory_space<vmem>>, vector<1x64x256xf32>
    %55 = vector.shape_cast %54 : vector<1x64x256xf32> to vector<64x256xf32>
    %56 = arith.index_cast %50 : i32 to index
    %c0_20 = arith.constant 0 : index
    %c0_21 = arith.constant 0 : index
    %57 = vector.load %arg4[%56, %c0_20, %c0_21] : memref<2x64x4xf32, #tpu.memory_space<vmem>>, vector<1x64x4xf32>
    %58 = vector.shape_cast %57 : vector<1x64x4xf32> to vector<64x4xf32>
    %59 = arith.index_cast %50 : i32 to index
    %c0_22 = arith.constant 0 : index
    %c0_23 = arith.constant 0 : index
    %60 = vector.load %arg5[%59, %c0_22, %c0_23] : memref<2x1x4xf32, #tpu.memory_space<vmem>>, vector<1x1x4xf32>
    %61 = vector.shape_cast %60 : vector<1x1x4xf32> to vector<1x4xf32>
    %62 = arith.index_cast %50 : i32 to index
    %c0_24 = arith.constant 0 : index
    %c0_25 = arith.constant 0 : index
    %63 = vector.load %arg6[%62, %c0_24, %c0_25] : memref<2x64x4xf32, #tpu.memory_space<vmem>>, vector<1x64x4xf32>
    %64 = vector.shape_cast %63 : vector<1x64x4xf32> to vector<64x4xf32>
    %65 = arith.index_cast %50 : i32 to index
    %c0_26 = arith.constant 0 : index
    %c0_27 = arith.constant 0 : index
    %66 = vector.load %arg7[%65, %c0_26, %c0_27] : memref<2x64x1xf32, #tpu.memory_space<vmem>>, vector<1x64x1xf32>
    %67 = vector.shape_cast %66 : vector<1x64x1xf32> to vector<64x1xf32>
    %cst_28 = arith.constant dense<0.000000e+00> : vector<64xf32>
    %68 = vector.multi_reduction <add>, %55, %cst_28 [1] : vector<64x256xf32> to vector<64xf32>
    %69 = vector.shape_cast %68 : vector<64xf32> to vector<64x1xf32>
    %cst_29 = arith.constant 2.560000e+02 : f32
    %70 = vector.broadcast %cst_29 : f32 to vector<64x1xf32>
    %71 = arith.divf %69, %70 : vector<64x1xf32>
    %72 = vector.broadcast %71 : vector<64x1xf32> to vector<64x4xf32>
    %73 = arith.mulf %58, %72 : vector<64x4xf32>
    %cst_30 = arith.constant dense<0.000000e+00> : vector<4xf32>
    %74 = vector.multi_reduction <add>, %73, %cst_30 [0] : vector<64x4xf32> to vector<4xf32>
    %75 = vector.shape_cast %74 : vector<4xf32> to vector<1x4xf32>
    %76 = arith.addf %75, %61 : vector<1x4xf32>
    %cst_31 = arith.constant 0.000000e+00 : f32
    %77 = vector.broadcast %cst_31 : f32 to vector<1x4xf32>
    %78 = arith.maximumf %76, %77 : vector<1x4xf32>
    %79 = vector.broadcast %78 : vector<1x4xf32> to vector<64x4xf32>
    %80 = arith.mulf %64, %79 : vector<64x4xf32>
    %cst_32 = arith.constant dense<0.000000e+00> : vector<64xf32>
    %81 = vector.multi_reduction <add>, %80, %cst_32 [1] : vector<64x4xf32> to vector<64xf32>
    %82 = vector.shape_cast %81 : vector<64xf32> to vector<64x1xf32>
    %83 = arith.addf %82, %67 : vector<64x1xf32>
    %84 = arith.negf %83 : vector<64x1xf32>
    %85 = math.exp %84 : vector<64x1xf32>
    %cst_33 = arith.constant 1.000000e+00 : f32
    %86 = vector.broadcast %cst_33 : f32 to vector<64x1xf32>
    %87 = arith.addf %86, %85 : vector<64x1xf32>
    %88 = arith.divf %86, %87 : vector<64x1xf32>
    %89 = vector.broadcast %88 : vector<64x1xf32> to vector<64x256xf32>
    %90 = arith.mulf %55, %89 : vector<64x256xf32>
    %c1 = arith.constant 1 : index
    %c0_34 = arith.constant 0 : index
    %c0_35 = arith.constant 0 : index
    %91 = vector.load %arg8[%c1, %c0_34, %c0_35] : memref<2x64x256xf32, #tpu.memory_space<vmem>>, vector<1x64x256xf32>
    %92 = vector.shape_cast %91 : vector<1x64x256xf32> to vector<64x256xf32>
    %93 = vector.shape_cast %90 : vector<64x256xf32> to vector<1x64x256xf32>
    tpu.vector_store %arg8[%c1, %c0_34, %c0_35], %93 {strides = array<i32>} : memref<2x64x256xf32, #tpu.memory_space<vmem>>, vector<1x64x256xf32>,
    return
  }
  func.func @transform_0(%arg0: i32, %arg1: memref<4xi32, #tpu.memory_space<smem>>, %arg2: memref<4xi32, #tpu.memory_space<smem>>) -> (i32, i32, i32) {
    %c0_i32 = arith.constant 0 : i32
    %c0_i32_0 = arith.constant 0 : i32
    %c0_i32_1 = arith.constant 0 : i32
    %c0_i32_2 = arith.constant 0 : i32
    return %c0_i32, %c0_i32_0, %c0_i32_1 : i32, i32, i32
  }
  func.func @transform_1(%arg0: i32, %arg1: memref<4xi32, #tpu.memory_space<smem>>, %arg2: memref<4xi32, #tpu.memory_space<smem>>) -> (i32, i32, i32) {
    %c0_i32 = arith.constant 0 : i32
    %c0_i32_0 = arith.constant 0 : i32
    %c0_i32_1 = arith.constant 0 : i32
    %c0_i32_2 = arith.constant 0 : i32
    return %c0_i32, %c0_i32_0, %c0_i32_1 : i32, i32, i32
  }
  func.func @transform_2(%arg0: i32, %arg1: memref<4xi32, #tpu.memory_space<smem>>, %arg2: memref<4xi32, #tpu.memory_space<smem>>) -> (i32, i32, i32) {
    %c0_i32 = arith.constant 0 : i32
    %c0_i32_0 = arith.constant 0 : i32
    %c0_i32_1 = arith.constant 0 : i32
    %c0_i32_2 = arith.constant 0 : i32
    return %c0_i32, %c0_i32_0, %c0_i32_1 : i32, i32, i32
  }
  func.func @transform_3(%arg0: i32, %arg1: memref<4xi32, #tpu.memory_space<smem>>, %arg2: memref<4xi32, #tpu.memory_space<smem>>) -> (i32, i32, i32) {
    %c0_i32 = arith.constant 0 : i32
    %c0_i32_0 = arith.constant 0 : i32
    %c0_i32_1 = arith.constant 0 : i32
    %c0_i32_2 = arith.constant 0 : i32
    return %c0_i32, %c0_i32_0, %c0_i32_1 : i32, i32, i32
  }
  func.func @transform_4(%arg0: i32, %arg1: memref<4xi32, #tpu.memory_space<smem>>, %arg2: memref<4xi32, #tpu.memory_space<smem>>) -> (i32, i32, i32) {
    %c0_i32 = arith.constant 0 : i32
    %c0_i32_0 = arith.constant 0 : i32
    %c0_i32_1 = arith.constant 0 : i32
    %c0_i32_2 = arith.constant 0 : i32
    return %c0_i32, %c0_i32_0, %c0_i32_1 : i32, i32, i32
  }
  func.func @transform_5(%arg0: i32, %arg1: memref<4xi32, #tpu.memory_space<smem>>, %arg2: memref<4xi32, #tpu.memory_space<smem>>) -> (i32, i32, i32) {
    %c0_i32 = arith.constant 0 : i32
    %c0_i32_0 = arith.constant 0 : i32
    %c0_i32_1 = arith.constant 0 : i32
    return %arg0, %c0_i32, %c0_i32_0 : i32, i32, i32
  }
}

</mosaic_0001>

<llo_original>
// kernel: dense_3d_dt_forward.1
$region0: #{dense_3d_dt_forward.1}
  #allocation0 [shape = 'u32[]', space=smem, size = 0x4, offset = 0x4, fixed_abs, tag = 'smem constant byte address 0x4 - core index']
  #allocation1 [shape = 'u32[144,128]{1,0:T(1,128)}', space=vmem, size = 0x12000, scoped, tag = 'internal scratch']
  #allocation2 [shape = 's32[1]{0}', space=sflag, size = 0x4, scoped, tag = 'scoped memory for dense_3d_dt_forward.1']
  #allocation3 [shape = 'u8[512]{0}', space=smem, size = 0x200, scoped, tag = 'prefetched SMEM operand 0']
  #allocation4 [shape = 'u8[512]{0}', space=smem, size = 0x200, scoped, tag = 'prefetched SMEM operand 1']
  %s0 = inlined_call_operand.vmem [shape: s32[4], index: 0, kind: input, shape index: {}]
  %s1 = inlined_call_operand.vmem [shape: s32[4], index: 1, kind: input, shape index: {}]
  %s2 = inlined_call_operand.vmem [shape: f32[4,64,256], index: 2, kind: input, shape index: {}]
  %s3 = inlined_call_operand.vmem [shape: f32[2,64,4], index: 3, kind: input, shape index: {}]
  %s4 = inlined_call_operand.vmem [shape: f32[2,1,4], index: 4, kind: input, shape index: {}]
  %s5 = inlined_call_operand.vmem [shape: f32[2,64,4], index: 5, kind: input, shape index: {}]
  %s6 = inlined_call_operand.vmem [shape: f32[2,64,1], index: 6, kind: input, shape index: {}]
  %s7 = inlined_call_operand.vmem [shape: f32[4,64,256], index: 7, kind: output, shape index: {}]
  %s8 = sld [smem:[#allocation0]]
  $region53: #{dense_3d_dt_forward.1} parent=0
    _
  %s10 = ssub.s32 1, %s8
  %s11 = scalar_select 0, %s10, %s8
  %s12 = sshll.u32 %s0, 4
  %s13 = int_to_ptr.vmem [resolvable:$true] %s12
  %15 = dma.vmem_to_smem %s13, 16, [#allocation3], [#allocation2]
  %s16 = sshll.u32 %s1, 4
  %s17 = int_to_ptr.vmem [resolvable:$true] %s16
  %19 = dma.vmem_to_smem %s17, 16, [#allocation4], [#allocation2]
  %20 = dma.done [#allocation2], 32
  %21 = sfence
  loop: start=0, step=1, limit=4
  $region2: #{dense_3d_dt_forward.1} parent=0 // loop_pre_header
    _
  $region3: #{dense_3d_dt_forward.1} parent=0 // loop_header
    %s23 = sphi 0, %s27
    %p24 = scmp.ge.s32.totalorder %s23, 4
    %s31 = sphi 0, %s31
    %s33 = sphi 0, %s31
    %s34 = sphi 0, %s33
    %s48 = sphi 0, %s34
    %s52 = sphi 0, %s52
    %s54 = sphi 0, %s52
    %s55 = sphi 0, %s54
    %s69 = sphi 0, %s55
    %s73 = sphi 0, %s73
    %s75 = sphi 0, %s73
    %s76 = sphi 0, %s75
    %s90 = sphi 0, %s76
    %s94 = sphi 0, %s94
    %s96 = sphi 0, %s94
    %s97 = sphi 0, %s96
    %s111 = sphi 0, %s97
    %s115 = sphi 0, %s115
    %s117 = sphi 0, %s115
    %s118 = sphi 0, %s117
    %s132 = sphi 0, %s118
    %s138 = sphi 0, %s140
    %s141 = sphi 0, %s138
    %s142 = sphi 0, %s141
    %s158 = sphi 0, %s142
  $region4: #{dense_3d_dt_forward.1} parent=0 // loop_header_branch
    %26 = sbr.rel (%p24) target = $region8
  $region5: #{dense_3d_dt_forward.1} parent=0 // loop_body
    %s28 = ssub.s32 %s23, 1
    %s29 = ssub.s32 %s23, 2
    %s30 = sadd.s32 %s23, 1
    %s32 = sadd.s32 %s31, 1
    %p35 = scmp.eq.s32.totalorder %s23, 1
    %p36 = scmp.ne.s32.totalorder %s31, %s33
    %p37 = scmp.eq.s32.totalorder %s23, 0
    %p38 = por %p36, %p37
    %p39 = scmp.ne.s32.totalorder %s31, %s33
    %p40 = scmp.eq.s32.totalorder %s28, 1
    %p41 = por %p39, %p40
    %p42 = scmp.ne.s32.totalorder %s33, %s34
    %p43 = scmp.eq.s32.totalorder %s28, 0
    %p44 = por %p42, %p43
    %p45 = scmp.ne.s32.totalorder %s33, %s34
    %p46 = scmp.eq.s32.totalorder %s29, 1
    %p47 = por %p45, %p46
    %p49 = scmp.ne.s32.totalorder %s34, %s48
    %p50 = scmp.eq.s32.totalorder %s29, 0
    %p51 = por %p49, %p50
    %s53 = sadd.s32 %s52, 1
    %p56 = scmp.eq.s32.totalorder %s23, 1
    %p57 = scmp.ne.s32.totalorder %s52, %s54
    %p58 = scmp.eq.s32.totalorder %s23, 0
    %p59 = por %p57, %p58
    %p60 = scmp.ne.s32.totalorder %s52, %s54
    %p61 = scmp.eq.s32.totalorder %s28, 1
    %p62 = por %p60, %p61
    %p63 = scmp.ne.s32.totalorder %s54, %s55
    %p64 = scmp.eq.s32.totalorder %s28, 0
    %p65 = por %p63, %p64
    %p66 = scmp.ne.s32.totalorder %s54, %s55
    %p67 = scmp.eq.s32.totalorder %s29, 1
    %p68 = por %p66, %p67
    %p70 = scmp.ne.s32.totalorder %s55, %s69
    %p71 = scmp.eq.s32.totalorder %s29, 0
    %p72 = por %p70, %p71
    %s74 = sadd.s32 %s73, 1
    %p77 = scmp.eq.s32.totalorder %s23, 1
    %p78 = scmp.ne.s32.totalorder %s73, %s75
    %p79 = scmp.eq.s32.totalorder %s23, 0
    %p80 = por %p78, %p79
    %p81 = scmp.ne.s32.totalorder %s73, %s75
    %p82 = scmp.eq.s32.totalorder %s28, 1
    %p83 = por %p81, %p82
    %p84 = scmp.ne.s32.totalorder %s75, %s76
    %p85 = scmp.eq.s32.totalorder %s28, 0
    %p86 = por %p84, %p85
    %p87 = scmp.ne.s32.totalorder %s75, %s76
    %p88 = scmp.eq.s32.totalorder %s29, 1
    %p89 = por %p87, %p88
    %p91 = scmp.ne.s32.totalorder %s76, %s90
    %p92 = scmp.eq.s32.totalorder %s29, 0
    %p93 = por %p91, %p92
    %s95 = sadd.s32 %s94, 1
    %p98 = scmp.eq.s32.totalorder %s23, 1
    %p99 = scmp.ne.s32.totalorder %s94, %s96
    %p100 = scmp.eq.s32.totalorder %s23, 0
    %p101 = por %p99, %p100
    %p102 = scmp.ne.s32.totalorder %s94, %s96
    %p103 = scmp.eq.s32.totalorder %s28, 1
    %p104 = por %p102, %p103
    %p105 = scmp.ne.s32.totalorder %s96, %s97
    %p106 = scmp.eq.s32.totalorder %s28, 0
    %p107 = por %p105, %p106
    %p108 = scmp.ne.s32.totalorder %s96, %s97
    %p109 = scmp.eq.s32.totalorder %s29, 1
    %p110 = por %p108, %p109
    %p112 = scmp.ne.s32.totalorder %s97, %s111
    %p113 = scmp.eq.s32.totalorder %s29, 0
    %p114 = por %p112, %p113
    %s116 = sadd.s32 %s115, 1
    %p119 = scmp.eq.s32.totalorder %s23, 1
    %p120 = scmp.ne.s32.totalorder %s115, %s117
    %p121 = scmp.eq.s32.totalorder %s23, 0
    %p122 = por %p120, %p121
    %p123 = scmp.ne.s32.totalorder %s115, %s117
    %p124 = scmp.eq.s32.totalorder %s28, 1
    %p125 = por %p123, %p124
    %p126 = scmp.ne.s32.totalorder %s117, %s118
    %p127 = scmp.eq.s32.totalorder %s28, 0
    %p128 = por %p126, %p127
    %p129 = scmp.ne.s32.totalorder %s117, %s118
    %p130 = scmp.eq.s32.totalorder %s29, 1
    %p131 = por %p129, %p130
    %p133 = scmp.ne.s32.totalorder %s118, %s132
    %p134 = scmp.eq.s32.totalorder %s29, 0
    %p135 = por %p133, %p134
    %s136 = ssub.s32 %s23, %s30
    %p137 = scmp.eq.s32.totalorder %s136, 0
    %s139 = sadd.s32 %s138, 1
    %s140 = scalar_select %p137, %s138, %s139
    %p143 = pneg %p137
    %p144 = scmp.eq.s32.totalorder %s23, 1
    %p145 = por %p143, %p144
    %p146 = scmp.ne.s32.totalorder %s138, %s141
    %p147 = scmp.eq.s32.totalorder %s23, 0
    %p148 = por %p146, %p147
    %p149 = scmp.ne.s32.totalorder %s138, %s141
    %p150 = scmp.eq.s32.totalorder %s28, 1
    %p151 = por %p149, %p150
    %p152 = scmp.ne.s32.totalorder %s141, %s142
    %p153 = scmp.eq.s32.totalorder %s28, 0
    %p154 = por %p152, %p153
    %p155 = scmp.ne.s32.totalorder %s141, %s142
    %p156 = scmp.eq.s32.totalorder %s29, 1
    %p157 = por %p155, %p156
    %p159 = scmp.ne.s32.totalorder %s142, %s158
    %p160 = scmp.eq.s32.totalorder %s29, 0
    %p161 = por %p159, %p160
    %p162 = scmp.le.s32.totalorder 1, %s23
    %p163 = scmp.lt.s32.totalorder %s23, 3
    %p164 = pnand %p162, %p163
    %p165 = pneg %p164
    // Predicated region
    $region9: #{dense_3d_dt_forward.1} parent=5 // pred_check
      _
    $region10: #{dense_3d_dt_forward.1} parent=5 // pred_check_branch
      %167 = sbr.rel (%p164) target = $region12
    $region11: #{dense_3d_dt_forward.1} parent=5 // pred_region
      %s168 = ssub.s32 %s23, 1
      // Predicated region
      $region13: #{dense_3d_dt_forward.1} parent=11 // pred_check
        %p169 = pneg %p44
      $region14: #{dense_3d_dt_forward.1} parent=11 // pred_check_branch
        %171 = sbr.rel (%p169) target = $region16
      $region15: #{dense_3d_dt_forward.1} parent=11 // pred_region
        _
      $region16: #{dense_3d_dt_forward.1} parent=11 // pred_fallthru
        _
      // Predicated region
      $region17: #{dense_3d_dt_forward.1} parent=11 // pred_check
        %p172 = pneg %p65
      $region18: #{dense_3d_dt_forward.1} parent=11 // pred_check_branch
        %174 = sbr.rel (%p172) target = $region20
      $region19: #{dense_3d_dt_forward.1} parent=11 // pred_region
        _
      $region20: #{dense_3d_dt_forward.1} parent=11 // pred_fallthru
        _
      // Predicated region
      $region21: #{dense_3d_dt_forward.1} parent=11 // pred_check
        %p175 = pneg %p86
      $region22: #{dense_3d_dt_forward.1} parent=11 // pred_check_branch
        %177 = sbr.rel (%p175) target = $region24
      $region23: #{dense_3d_dt_forward.1} parent=11 // pred_region
        _
      $region24: #{dense_3d_dt_forward.1} parent=11 // pred_fallthru
        _
      // Predicated region
      $region25: #{dense_3d_dt_forward.1} parent=11 // pred_check
        %p178 = pneg %p107
      $region26: #{dense_3d_dt_forward.1} parent=11 // pred_check_branch
        %180 = sbr.rel (%p178) target = $region28
      $region27: #{dense_3d_dt_forward.1} parent=11 // pred_region
        _
      $region28: #{dense_3d_dt_forward.1} parent=11 // pred_fallthru
        _
      // Predicated region
      $region29: #{dense_3d_dt_forward.1} parent=11 // pred_check
        %p181 = pneg %p128
      $region30: #{dense_3d_dt_forward.1} parent=11 // pred_check_branch
        %183 = sbr.rel (%p181) target = $region32
      $region31: #{dense_3d_dt_forward.1} parent=11 // pred_region
        _
      $region32: #{dense_3d_dt_forward.1} parent=11 // pred_fallthru
        _
    $region12: #{dense_3d_dt_forward.1} parent=5 // pred_fallthru
      _
    %p184 = scmp.lt.s32.totalorder %s23, 2
    // Predicated region
    $region33: #{dense_3d_dt_forward.1} parent=5 // pred_check
      %p185 = pneg %p184
    $region34: #{dense_3d_dt_forward.1} parent=5 // pred_check_branch
      %187 = sbr.rel (%p185) target = $region36
    $region35: #{dense_3d_dt_forward.1} parent=5 // pred_region
      _
    $region36: #{dense_3d_dt_forward.1} parent=5 // pred_fallthru
      _
    %p188 = scmp.le.s32.totalorder 1, %s23
    %p189 = scmp.lt.s32.totalorder %s23, 3
    %p190 = pnand %p188, %p189
    %p191 = pneg %p190
    // Predicated region
    $region37: #{dense_3d_dt_forward.1} parent=5 // pred_check
      _
    $region38: #{dense_3d_dt_forward.1} parent=5 // pred_check_branch
      %193 = sbr.rel (%p190) target = $region40
    $region39: #{dense_3d_dt_forward.1} parent=5 // pred_region
      %s194 = ssub.s32 %s23, 1
      %p195 = pneg %p44
      %p196 = pneg %p41
      %p197 = pneg %p65
      %p198 = pneg %p62
      %p199 = pneg %p86
      %p200 = pneg %p83
      %p201 = pneg %p107
      %p202 = pneg %p104
      %p203 = pneg %p128
      %p204 = pneg %p125
      %p205 = pneg %p154
      %p206 = pneg %p151
      %s207 = smul.u32 2, %s28
      %p208 = scmp.lt.s32.totalorder %s207, 3
      %s209 = scalar_select %p208, %s207, 3
      %s210 = smul.addr %s209, 16
      %s211 = smul.addr %s210, 8
      %s212 = scalar_lea.vmem %s7, %s211
      %s213 = smul.u32 2, %s28
      %p214 = scmp.lt.s32.totalorder %s213, 3
      %s215 = scalar_select %p214, %s213, 3
      %s216 = smul.addr %s215, 16
      %s217 = smul.addr %s216, 8
      %s218 = scalar_lea.vmem %s7, %s217
      %s219 = smul.u32 2, %s28
      %s220 = smul.u32 %s28, 2
      %s221 = sld [smem:[#allocation4 + %s220]]
      %s222 = sld [smem:[#allocation3 + %s220]]
      %s223 = smul.u32 %s222, 16
      %s224 = smul.addr %s223, 8
      %s225 = scalar_lea.vmem %s2, %s224
      %v226 = vld [vmem:[%s225] sm:$0xff]
      %v227 = vld [vmem:[%s225 + $0x8] sm:$0xff]
      %v228 = vld [vmem:[%s225 + $0x10] sm:$0xff]
      %v229 = vld [vmem:[%s225 + $0x18] sm:$0xff]
      %v230 = vld [vmem:[%s225 + $0x20] sm:$0xff]
      %v231 = vld [vmem:[%s225 + $0x28] sm:$0xff]
      %v232 = vld [vmem:[%s225 + $0x30] sm:$0xff]
      %v233 = vld [vmem:[%s225 + $0x38] sm:$0xff]
      %v234 = vld [vmem:[%s225 + $0x40] sm:$0xff]
      %v235 = vld [vmem:[%s225 + $0x48] sm:$0xff]
      %v236 = vld [vmem:[%s225 + $0x50] sm:$0xff]
      %v237 = vld [vmem:[%s225 + $0x58] sm:$0xff]
      %v238 = vld [vmem:[%s225 + $0x60] sm:$0xff]
      %v239 = vld [vmem:[%s225 + $0x68] sm:$0xff]
      %v240 = vld [vmem:[%s225 + $0x70] sm:$0xff]
      %v241 = vld [vmem:[%s225 + $0x78] sm:$0xff]
      %s242 = smul.u32 %s221, 64
      %s243 = scalar_lea.vmem %s3, %s242
      %v244 = vld [vmem:[%s243] sm:$0xff]
      %v245 = vld [vmem:[%s243 + $0x8] sm:$0xff]
      %v246 = vld [vmem:[%s243 + $0x10] sm:$0xff]
      %v247 = vld [vmem:[%s243 + $0x18] sm:$0xff]
      %v248 = vld [vmem:[%s243 + $0x20] sm:$0xff]
      %v249 = vld [vmem:[%s243 + $0x28] sm:$0xff]
      %v250 = vld [vmem:[%s243 + $0x30] sm:$0xff]
      %v251 = vld [vmem:[%s243 + $0x38] sm:$0xff]
      %s252 = scalar_lea.vmem %s4, %s221
      %v253 = vld [vmem:[%s252] sm:$0x1]
      %s254 = scalar_lea.vmem %s5, %s242
      %v255 = vld [vmem:[%s254] sm:$0xff]
      %v256 = vld [vmem:[%s254 + $0x8] sm:$0xff]
      %v257 = vld [vmem:[%s254 + $0x10] sm:$0xff]
      %v258 = vld [vmem:[%s254 + $0x18] sm:$0xff]
      %v259 = vld [vmem:[%s254 + $0x20] sm:$0xff]
      %v260 = vld [vmem:[%s254 + $0x28] sm:$0xff]
      %v261 = vld [vmem:[%s254 + $0x30] sm:$0xff]
      %v262 = vld [vmem:[%s254 + $0x38] sm:$0xff]
      %s263 = scalar_lea.vmem %s6, %s242
      %v264 = vld [vmem:[%s263] sm:$0xff]
      %v265 = vld [vmem:[%s263 + $0x8] sm:$0xff]
      %v266 = vld [vmem:[%s263 + $0x10] sm:$0xff]
      %v267 = vld [vmem:[%s263 + $0x18] sm:$0xff]
      %v268 = vld [vmem:[%s263 + $0x20] sm:$0xff]
      %v269 = vld [vmem:[%s263 + $0x28] sm:$0xff]
      %v270 = vld [vmem:[%s263 + $0x30] sm:$0xff]
      %v271 = vld [vmem:[%s263 + $0x38] sm:$0xff]
      %v272 = vadd.f32 %v226, %v227
      %273 = vadd.xlane.f32.xlu0 %v272
      %v274 = vpop.xlane.xlu0 %273
      %v275 = vadd.f32 %v228, %v229
      %276 = vadd.xlane.f32.xlu0 %v275
      %v277 = vpop.xlane.xlu0 %276
      %v278 = vadd.f32 %v230, %v231
      %279 = vadd.xlane.f32.xlu0 %v278
      %v280 = vpop.xlane.xlu0 %279
      %v281 = vadd.f32 %v232, %v233
      %282 = vadd.xlane.f32.xlu0 %v281
      %v283 = vpop.xlane.xlu0 %282
      %v284 = vadd.f32 %v234, %v235
      %285 = vadd.xlane.f32.xlu0 %v284
      %v286 = vpop.xlane.xlu0 %285
      %v287 = vadd.f32 %v236, %v237
      %288 = vadd.xlane.f32.xlu0 %v287
      %v289 = vpop.xlane.xlu0 %288
      %v290 = vadd.f32 %v238, %v239
      %291 = vadd.xlane.f32.xlu0 %v290
      %v292 = vpop.xlane.xlu0 %291
      %v293 = vadd.f32 %v240, %v241
      %294 = vadd.xlane.f32.xlu0 %v293
      %v295 = vpop.xlane.xlu0 %294
      %v296 = vrcp.pop 256.0
      %v297 = vmul.f32 %v274, %v296
      %v298 = vmul.f32 %v277, %v296
      %v299 = vmul.f32 %v280, %v296
      %v300 = vmul.f32 %v283, %v296
      %v301 = vmul.f32 %v286, %v296
      %v302 = vmul.f32 %v289, %v296
      %v303 = vmul.f32 %v292, %v296
      %v304 = vmul.f32 %v295, %v296
      %v305 = vmul.f32 %v244, %v297
      %v306 = vmul.f32 %v245, %v298
      %v307 = vmul.f32 %v246, %v299
      %v308 = vmul.f32 %v247, %v300
      %v309 = vmul.f32 %v248, %v301
      %v310 = vmul.f32 %v249, %v302
      %v311 = vmul.f32 %v250, %v303
      %v312 = vmul.f32 %v251, %v304
      %vm313 = vcmask 31744
      %v314 = vsel %vm313, %v305, 0.0
      %v315 = vsel %vm313, %v306, 0.0
      %v316 = vadd.f32 %v314, %v315
      %v317 = vsel %vm313, %v307, 0.0
      %v318 = vadd.f32 %v316, %v317
      %v319 = vsel %vm313, %v308, 0.0
      %v320 = vadd.f32 %v318, %v319
      %v321 = vsel %vm313, %v309, 0.0
      %v322 = vadd.f32 %v320, %v321
      %v323 = vsel %vm313, %v310, 0.0
      %v324 = vadd.f32 %v322, %v323
      %v325 = vsel %vm313, %v311, 0.0
      %v326 = vadd.f32 %v324, %v325
      %v327 = vsel %vm313, %v312, 0.0
      %v328 = vadd.f32 %v326, %v327
      %v329 = vrot.slane %v328, 4
      %v330 = vadd.f32 %v328, %v329
      %v331 = vrot.slane %v330, 2
      %v332 = vadd.f32 %v330, %v331
      %v333 = vrot.slane %v332, 1
      %v334 = vadd.f32 %v332, %v333
      %v335 = vadd.f32 %v334, %v253
      %v336 = vmax.f32 %v335, 0.0
      %v337 = vlaneseq
      %v338 = vshrl.u32 %v337, 7
      %v339 = vsub.s32 0, %v338
      %v340 = vrot.slane %v336, %v339
      %v341 = vmul.f32 %v255, %v340
      %v342 = vmul.f32 %v256, %v340
      %v343 = vmul.f32 %v257, %v340
      %v344 = vmul.f32 %v258, %v340
      %v345 = vmul.f32 %v259, %v340
      %v346 = vmul.f32 %v260, %v340
      %v347 = vmul.f32 %v261, %v340
      %v348 = vmul.f32 %v262, %v340
      %v349 = vsel %vm313, %v341, 0.0
      %350 = vadd.xlane.f32.xlu0 %v349
      %v351 = vpop.xlane.xlu0 %350
      %v352 = vsel %vm313, %v342, 0.0
      %353 = vadd.xlane.f32.xlu0 %v352
      %v354 = vpop.xlane.xlu0 %353
      %v355 = vsel %vm313, %v343, 0.0
      %356 = vadd.xlane.f32.xlu0 %v355
      %v357 = vpop.xlane.xlu0 %356
      %v358 = vsel %vm313, %v344, 0.0
      %359 = vadd.xlane.f32.xlu0 %v358
      %v360 = vpop.xlane.xlu0 %359
      %v361 = vsel %vm313, %v345, 0.0
      %362 = vadd.xlane.f32.xlu0 %v361
      %v363 = vpop.xlane.xlu0 %362
      %v364 = vsel %vm313, %v346, 0.0
      %365 = vadd.xlane.f32.xlu0 %v364
      %v366 = vpop.xlane.xlu0 %365
      %v367 = vsel %vm313, %v347, 0.0
      %368 = vadd.xlane.f32.xlu0 %v367
      %v369 = vpop.xlane.xlu0 %368
      %v370 = vsel %vm313, %v348, 0.0
      %371 = vadd.xlane.f32.xlu0 %v370
      %v372 = vpop.xlane.xlu0 %371
      %v373 = vadd.f32 %v351, %v264
      %v374 = vadd.f32 %v354, %v265
      %v375 = vadd.f32 %v357, %v266
      %v376 = vadd.f32 %v360, %v267
      %v377 = vadd.f32 %v363, %v268
      %v378 = vadd.f32 %v366, %v269
      %v379 = vadd.f32 %v369, %v270
      %v380 = vadd.f32 %v372, %v271
      %v381 = vxor.u32 %v373, 2147483648
      %v382 = vxor.u32 %v374, 2147483648
      %v383 = vxor.u32 %v375, 2147483648
      %v384 = vxor.u32 %v376, 2147483648
      %v385 = vxor.u32 %v377, 2147483648
      %v386 = vxor.u32 %v378, 2147483648
      %v387 = vxor.u32 %v379, 2147483648
      %v388 = vxor.u32 %v380, 2147483648
      %v389 = vmul.f32 %v381, 1.442695
      %v390 = vpow.pop %v389
      %v391 = vmul.f32 %v382, 1.442695
      %v392 = vpow.pop %v391
      %v393 = vmul.f32 %v383, 1.442695
      %v394 = vpow.pop %v393
      %v395 = vmul.f32 %v384, 1.442695
      %v396 = vpow.pop %v395
      %v397 = vmul.f32 %v385, 1.442695
      %v398 = vpow.pop %v397
      %v399 = vmul.f32 %v386, 1.442695
      %v400 = vpow.pop %v399
      %v401 = vmul.f32 %v387, 1.442695
      %v402 = vpow.pop %v401
      %v403 = vmul.f32 %v388, 1.442695
      %v404 = vpow.pop %v403
      %v405 = vadd.f32 %v390, 1.0
      %v406 = vadd.f32 %v392, 1.0
      %v407 = vadd.f32 %v394, 1.0
      %v408 = vadd.f32 %v396, 1.0
      %v409 = vadd.f32 %v398, 1.0
      %v410 = vadd.f32 %v400, 1.0
      %v411 = vadd.f32 %v402, 1.0
      %v412 = vadd.f32 %v404, 1.0
      %v413 = vrcp.pop %v405
      %v414 = vmul.f32 1.0, %v413
      %v415 = vrcp.pop %v406
      %v416 = vmul.f32 1.0, %v415
      %v417 = vrcp.pop %v407
      %v418 = vmul.f32 1.0, %v417
      %v419 = vrcp.pop %v408
      %v420 = vmul.f32 1.0, %v419
      %v421 = vrcp.pop %v409
      %v422 = vmul.f32 1.0, %v421
      %v423 = vrcp.pop %v410
      %v424 = vmul.f32 1.0, %v423
      %v425 = vrcp.pop %v411
      %v426 = vmul.f32 1.0, %v425
      %v427 = vrcp.pop %v412
      %v428 = vmul.f32 1.0, %v427
      %430 = vset.pattern.permute.xlu0 0
      %431 = vperm.xlu0 %430, %v414
      %v432 = vpop.permute.xlu0 %431
      %435 = vset.pattern.permute.xlu0 0
      %436 = vperm.xlu0 %435, %v416
      %v437 = vpop.permute.xlu0 %436
      %440 = vset.pattern.permute.xlu0 0
      %441 = vperm.xlu0 %440, %v418
      %v442 = vpop.permute.xlu0 %441
      %445 = vset.pattern.permute.xlu0 0
      %446 = vperm.xlu0 %445, %v420
      %v447 = vpop.permute.xlu0 %446
      %450 = vset.pattern.permute.xlu0 0
      %451 = vperm.xlu0 %450, %v422
      %v452 = vpop.permute.xlu0 %451
      %455 = vset.pattern.permute.xlu0 0
      %456 = vperm.xlu0 %455, %v424
      %v457 = vpop.permute.xlu0 %456
      %460 = vset.pattern.permute.xlu0 0
      %461 = vperm.xlu0 %460, %v426
      %v462 = vpop.permute.xlu0 %461
      %465 = vset.pattern.permute.xlu0 0
      %466 = vperm.xlu0 %465, %v428
      %v467 = vpop.permute.xlu0 %466
      %v469 = vmul.f32 %v226, %v432
      %v470 = vmul.f32 %v227, %v432
      %v471 = vmul.f32 %v228, %v437
      %v472 = vmul.f32 %v229, %v437
      %v473 = vmul.f32 %v230, %v442
      %v474 = vmul.f32 %v231, %v442
      %v475 = vmul.f32 %v232, %v447
      %v476 = vmul.f32 %v233, %v447
      %v477 = vmul.f32 %v234, %v452
      %v478 = vmul.f32 %v235, %v452
      %v479 = vmul.f32 %v236, %v457
      %v480 = vmul.f32 %v237, %v457
      %v481 = vmul.f32 %v238, %v462
      %v482 = vmul.f32 %v239, %v462
      %v483 = vmul.f32 %v240, %v467
      %v484 = vmul.f32 %v241, %v467
      %485 = vst [vmem:[%s218] sm:$0xff] %v469
      %486 = vst [vmem:[%s218 + $0x8] sm:$0xff] %v470
      %487 = vst [vmem:[%s218 + $0x10] sm:$0xff] %v471
      %488 = vst [vmem:[%s218 + $0x18] sm:$0xff] %v472
      %489 = vst [vmem:[%s218 + $0x20] sm:$0xff] %v473
      %490 = vst [vmem:[%s218 + $0x28] sm:$0xff] %v474
      %491 = vst [vmem:[%s218 + $0x30] sm:$0xff] %v475
      %492 = vst [vmem:[%s218 + $0x38] sm:$0xff] %v476
      %493 = vst [vmem:[%s218 + $0x40] sm:$0xff] %v477
      %494 = vst [vmem:[%s218 + $0x48] sm:$0xff] %v478
      %495 = vst [vmem:[%s218 + $0x50] sm:$0xff] %v479
      %496 = vst [vmem:[%s218 + $0x58] sm:$0xff] %v480
      %497 = vst [vmem:[%s218 + $0x60] sm:$0xff] %v481
      %498 = vst [vmem:[%s218 + $0x68] sm:$0xff] %v482
      %499 = vst [vmem:[%s218 + $0x70] sm:$0xff] %v483
      %500 = vst [vmem:[%s218 + $0x78] sm:$0xff] %v484
      %s501 = sadd.s32 %s220, 1
      %s502 = sld [smem:[#allocation4 + %s501]]
      %s503 = sld [smem:[#allocation3 + %s501]]
      %s504 = smul.u32 %s503, 16
      %s505 = smul.addr %s504, 8
      %s506 = scalar_lea.vmem %s2, %s505
      %v507 = vld [vmem:[%s506] sm:$0xff]
      %v508 = vld [vmem:[%s506 + $0x8] sm:$0xff]
      %v509 = vld [vmem:[%s506 + $0x10] sm:$0xff]
      %v510 = vld [vmem:[%s506 + $0x18] sm:$0xff]
      %v511 = vld [vmem:[%s506 + $0x20] sm:$0xff]
      %v512 = vld [vmem:[%s506 + $0x28] sm:$0xff]
      %v513 = vld [vmem:[%s506 + $0x30] sm:$0xff]
      %v514 = vld [vmem:[%s506 + $0x38] sm:$0xff]
      %v515 = vld [vmem:[%s506 + $0x40] sm:$0xff]
      %v516 = vld [vmem:[%s506 + $0x48] sm:$0xff]
      %v517 = vld [vmem:[%s506 + $0x50] sm:$0xff]
      %v518 = vld [vmem:[%s506 + $0x58] sm:$0xff]
      %v519 = vld [vmem:[%s506 + $0x60] sm:$0xff]
      %v520 = vld [vmem:[%s506 + $0x68] sm:$0xff]
      %v521 = vld [vmem:[%s506 + $0x70] sm:$0xff]
      %v522 = vld [vmem:[%s506 + $0x78] sm:$0xff]
      %s523 = smul.u32 %s502, 64
      %s524 = scalar_lea.vmem %s3, %s523
      %v525 = vld [vmem:[%s524] sm:$0xff]
      %v526 = vld [vmem:[%s524 + $0x8] sm:$0xff]
      %v527 = vld [vmem:[%s524 + $0x10] sm:$0xff]
      %v528 = vld [vmem:[%s524 + $0x18] sm:$0xff]
      %v529 = vld [vmem:[%s524 + $0x20] sm:$0xff]
      %v530 = vld [vmem:[%s524 + $0x28] sm:$0xff]
      %v531 = vld [vmem:[%s524 + $0x30] sm:$0xff]
      %v532 = vld [vmem:[%s524 + $0x38] sm:$0xff]
      %s533 = scalar_lea.vmem %s4, %s502
      %v534 = vld [vmem:[%s533] sm:$0x1]
      %s535 = scalar_lea.vmem %s5, %s523
      %v536 = vld [vmem:[%s535] sm:$0xff]
      %v537 = vld [vmem:[%s535 + $0x8] sm:$0xff]
      %v538 = vld [vmem:[%s535 + $0x10] sm:$0xff]
      %v539 = vld [vmem:[%s535 + $0x18] sm:$0xff]
      %v540 = vld [vmem:[%s535 + $0x20] sm:$0xff]
      %v541 = vld [vmem:[%s535 + $0x28] sm:$0xff]
      %v542 = vld [vmem:[%s535 + $0x30] sm:$0xff]
      %v543 = vld [vmem:[%s535 + $0x38] sm:$0xff]
      %s544 = scalar_lea.vmem %s6, %s523
      %v545 = vld [vmem:[%s544] sm:$0xff]
      %v546 = vld [vmem:[%s544 + $0x8] sm:$0xff]
      %v547 = vld [vmem:[%s544 + $0x10] sm:$0xff]
      %v548 = vld [vmem:[%s544 + $0x18] sm:$0xff]
      %v549 = vld [vmem:[%s544 + $0x20] sm:$0xff]
      %v550 = vld [vmem:[%s544 + $0x28] sm:$0xff]
      %v551 = vld [vmem:[%s544 + $0x30] sm:$0xff]
      %v552 = vld [vmem:[%s544 + $0x38] sm:$0xff]
      %v553 = vadd.f32 %v507, %v508
      %554 = vadd.xlane.f32.xlu0 %v553
      %v555 = vpop.xlane.xlu0 %554
      %v556 = vadd.f32 %v509, %v510
      %557 = vadd.xlane.f32.xlu0 %v556
      %v558 = vpop.xlane.xlu0 %557
      %v559 = vadd.f32 %v511, %v512
      %560 = vadd.xlane.f32.xlu0 %v559
      %v561 = vpop.xlane.xlu0 %560
      %v562 = vadd.f32 %v513, %v514
      %563 = vadd.xlane.f32.xlu0 %v562
      %v564 = vpop.xlane.xlu0 %563
      %v565 = vadd.f32 %v515, %v516
      %566 = vadd.xlane.f32.xlu0 %v565
      %v567 = vpop.xlane.xlu0 %566
      %v568 = vadd.f32 %v517, %v518
      %569 = vadd.xlane.f32.xlu0 %v568
      %v570 = vpop.xlane.xlu0 %569
      %v571 = vadd.f32 %v519, %v520
      %572 = vadd.xlane.f32.xlu0 %v571
      %v573 = vpop.xlane.xlu0 %572
      %v574 = vadd.f32 %v521, %v522
      %575 = vadd.xlane.f32.xlu0 %v574
      %v576 = vpop.xlane.xlu0 %575
      %v577 = vmul.f32 %v555, %v296
      %v578 = vmul.f32 %v558, %v296
      %v579 = vmul.f32 %v561, %v296
      %v580 = vmul.f32 %v564, %v296
      %v581 = vmul.f32 %v567, %v296
      %v582 = vmul.f32 %v570, %v296
      %v583 = vmul.f32 %v573, %v296
      %v584 = vmul.f32 %v576, %v296
      %v585 = vmul.f32 %v525, %v577
      %v586 = vmul.f32 %v526, %v578
      %v587 = vmul.f32 %v527, %v579
      %v588 = vmul.f32 %v528, %v580
      %v589 = vmul.f32 %v529, %v581
      %v590 = vmul.f32 %v530, %v582
      %v591 = vmul.f32 %v531, %v583
      %v592 = vmul.f32 %v532, %v584
      %v593 = vsel %vm313, %v585, 0.0
      %v594 = vsel %vm313, %v586, 0.0
      %v595 = vadd.f32 %v593, %v594
      %v596 = vsel %vm313, %v587, 0.0
      %v597 = vadd.f32 %v595, %v596
      %v598 = vsel %vm313, %v588, 0.0
      %v599 = vadd.f32 %v597, %v598
      %v600 = vsel %vm313, %v589, 0.0
      %v601 = vadd.f32 %v599, %v600
      %v602 = vsel %vm313, %v590, 0.0
      %v603 = vadd.f32 %v601, %v602
      %v604 = vsel %vm313, %v591, 0.0
      %v605 = vadd.f32 %v603, %v604
      %v606 = vsel %vm313, %v592, 0.0
      %v607 = vadd.f32 %v605, %v606
      %v608 = vrot.slane %v607, 4
      %v609 = vadd.f32 %v607, %v608
      %v610 = vrot.slane %v609, 2
      %v611 = vadd.f32 %v609, %v610
      %v612 = vrot.slane %v611, 1
      %v613 = vadd.f32 %v611, %v612
      %v614 = vadd.f32 %v613, %v534
      %v615 = vmax.f32 %v614, 0.0
      %v616 = vlaneseq
      %v617 = vshrl.u32 %v616, 7
      %v618 = vsub.s32 0, %v617
      %v619 = vrot.slane %v615, %v618
      %v620 = vmul.f32 %v536, %v619
      %v621 = vmul.f32 %v537, %v619
      %v622 = vmul.f32 %v538, %v619
      %v623 = vmul.f32 %v539, %v619
      %v624 = vmul.f32 %v540, %v619
      %v625 = vmul.f32 %v541, %v619
      %v626 = vmul.f32 %v542, %v619
      %v627 = vmul.f32 %v543, %v619
      %v628 = vsel %vm313, %v620, 0.0
      %629 = vadd.xlane.f32.xlu0 %v628
      %v630 = vpop.xlane.xlu0 %629
      %v631 = vsel %vm313, %v621, 0.0
      %632 = vadd.xlane.f32.xlu0 %v631
      %v633 = vpop.xlane.xlu0 %632
      %v634 = vsel %vm313, %v622, 0.0
      %635 = vadd.xlane.f32.xlu0 %v634
      %v636 = vpop.xlane.xlu0 %635
      %v637 = vsel %vm313, %v623, 0.0
      %638 = vadd.xlane.f32.xlu0 %v637
      %v639 = vpop.xlane.xlu0 %638
      %v640 = vsel %vm313, %v624, 0.0
      %641 = vadd.xlane.f32.xlu0 %v640
      %v642 = vpop.xlane.xlu0 %641
      %v643 = vsel %vm313, %v625, 0.0
      %644 = vadd.xlane.f32.xlu0 %v643
      %v645 = vpop.xlane.xlu0 %644
      %v646 = vsel %vm313, %v626, 0.0
      %647 = vadd.xlane.f32.xlu0 %v646
      %v648 = vpop.xlane.xlu0 %647
      %v649 = vsel %vm313, %v627, 0.0
      %650 = vadd.xlane.f32.xlu0 %v649
      %v651 = vpop.xlane.xlu0 %650
      %v652 = vadd.f32 %v630, %v545
      %v653 = vadd.f32 %v633, %v546
      %v654 = vadd.f32 %v636, %v547
      %v655 = vadd.f32 %v639, %v548
      %v656 = vadd.f32 %v642, %v549
      %v657 = vadd.f32 %v645, %v550
      %v658 = vadd.f32 %v648, %v551
      %v659 = vadd.f32 %v651, %v552
      %v660 = vxor.u32 %v652, 2147483648
      %v661 = vxor.u32 %v653, 2147483648
      %v662 = vxor.u32 %v654, 2147483648
      %v663 = vxor.u32 %v655, 2147483648
      %v664 = vxor.u32 %v656, 2147483648
      %v665 = vxor.u32 %v657, 2147483648
      %v666 = vxor.u32 %v658, 2147483648
      %v667 = vxor.u32 %v659, 2147483648
      %v668 = vmul.f32 %v660, 1.442695
      %v669 = vpow.pop %v668
      %v670 = vmul.f32 %v661, 1.442695
      %v671 = vpow.pop %v670
      %v672 = vmul.f32 %v662, 1.442695
      %v673 = vpow.pop %v672
      %v674 = vmul.f32 %v663, 1.442695
      %v675 = vpow.pop %v674
      %v676 = vmul.f32 %v664, 1.442695
      %v677 = vpow.pop %v676
      %v678 = vmul.f32 %v665, 1.442695
      %v679 = vpow.pop %v678
      %v680 = vmul.f32 %v666, 1.442695
      %v681 = vpow.pop %v680
      %v682 = vmul.f32 %v667, 1.442695
      %v683 = vpow.pop %v682
      %v684 = vadd.f32 %v669, 1.0
      %v685 = vadd.f32 %v671, 1.0
      %v686 = vadd.f32 %v673, 1.0
      %v687 = vadd.f32 %v675, 1.0
      %v688 = vadd.f32 %v677, 1.0
      %v689 = vadd.f32 %v679, 1.0
      %v690 = vadd.f32 %v681, 1.0
      %v691 = vadd.f32 %v683, 1.0
      %v692 = vrcp.pop %v684
      %v693 = vmul.f32 1.0, %v692
      %v694 = vrcp.pop %v685
      %v695 = vmul.f32 1.0, %v694
      %v696 = vrcp.pop %v686
      %v697 = vmul.f32 1.0, %v696
      %v698 = vrcp.pop %v687
      %v699 = vmul.f32 1.0, %v698
      %v700 = vrcp.pop %v688
      %v701 = vmul.f32 1.0, %v700
      %v702 = vrcp.pop %v689
      %v703 = vmul.f32 1.0, %v702
      %v704 = vrcp.pop %v690
      %v705 = vmul.f32 1.0, %v704
      %v706 = vrcp.pop %v691
      %v707 = vmul.f32 1.0, %v706
      %709 = vset.pattern.permute.xlu0 0
      %710 = vperm.xlu0 %709, %v693
      %v711 = vpop.permute.xlu0 %710
      %714 = vset.pattern.permute.xlu0 0
      %715 = vperm.xlu0 %714, %v695
      %v716 = vpop.permute.xlu0 %715
      %719 = vset.pattern.permute.xlu0 0
      %720 = vperm.xlu0 %719, %v697
      %v721 = vpop.permute.xlu0 %720
      %724 = vset.pattern.permute.xlu0 0
      %725 = vperm.xlu0 %724, %v699
      %v726 = vpop.permute.xlu0 %725
      %729 = vset.pattern.permute.xlu0 0
      %730 = vperm.xlu0 %729, %v701
      %v731 = vpop.permute.xlu0 %730
      %734 = vset.pattern.permute.xlu0 0
      %735 = vperm.xlu0 %734, %v703
      %v736 = vpop.permute.xlu0 %735
      %739 = vset.pattern.permute.xlu0 0
      %740 = vperm.xlu0 %739, %v705
      %v741 = vpop.permute.xlu0 %740
      %744 = vset.pattern.permute.xlu0 0
      %745 = vperm.xlu0 %744, %v707
      %v746 = vpop.permute.xlu0 %745
      %v748 = vmul.f32 %v507, %v711
      %v749 = vmul.f32 %v508, %v711
      %v750 = vmul.f32 %v509, %v716
      %v751 = vmul.f32 %v510, %v716
      %v752 = vmul.f32 %v511, %v721
      %v753 = vmul.f32 %v512, %v721
      %v754 = vmul.f32 %v513, %v726
      %v755 = vmul.f32 %v514, %v726
      %v756 = vmul.f32 %v515, %v731
      %v757 = vmul.f32 %v516, %v731
      %v758 = vmul.f32 %v517, %v736
      %v759 = vmul.f32 %v518, %v736
      %v760 = vmul.f32 %v519, %v741
      %v761 = vmul.f32 %v520, %v741
      %v762 = vmul.f32 %v521, %v746
      %v763 = vmul.f32 %v522, %v746
      %s764 = scalar_lea.vmem %s218, 128
      %765 = vst [vmem:[%s764] sm:$0xff] %v748
      %766 = vst [vmem:[%s764 + $0x8] sm:$0xff] %v749
      %767 = vst [vmem:[%s764 + $0x10] sm:$0xff] %v750
      %768 = vst [vmem:[%s764 + $0x18] sm:$0xff] %v751
      %769 = vst [vmem:[%s764 + $0x20] sm:$0xff] %v752
      %770 = vst [vmem:[%s764 + $0x28] sm:$0xff] %v753
      %771 = vst [vmem:[%s764 + $0x30] sm:$0xff] %v754
      %772 = vst [vmem:[%s764 + $0x38] sm:$0xff] %v755
      %773 = vst [vmem:[%s764 + $0x40] sm:$0xff] %v756
      %774 = vst [vmem:[%s764 + $0x48] sm:$0xff] %v757
      %775 = vst [vmem:[%s764 + $0x50] sm:$0xff] %v758
      %776 = vst [vmem:[%s764 + $0x58] sm:$0xff] %v759
      %777 = vst [vmem:[%s764 + $0x60] sm:$0xff] %v760
      %778 = vst [vmem:[%s764 + $0x68] sm:$0xff] %v761
      %779 = vst [vmem:[%s764 + $0x70] sm:$0xff] %v762
      %780 = vst [vmem:[%s764 + $0x78] sm:$0xff] %v763
      %s781 = smul.u32 2, %s28
      %p782 = scmp.lt.s32.totalorder %s781, 3
      %s783 = scalar_select %p782, %s781, 3
      %s784 = smul.addr %s783, 16
      %s785 = smul.addr %s784, 8
      %s786 = scalar_lea.vmem %s7, %s785
      // Predicated region
      $region41: #{dense_3d_dt_forward.1} parent=39 // pred_check
        %p787 = pneg %p151
      $region42: #{dense_3d_dt_forward.1} parent=39 // pred_check_branch
        %789 = sbr.rel (%p787) target = $region44
      $region43: #{dense_3d_dt_forward.1} parent=39 // pred_region
        %s790 = smul.u32 2, %s28
      $region44: #{dense_3d_dt_forward.1} parent=39 // pred_fallthru
        _
    $region40: #{dense_3d_dt_forward.1} parent=5 // pred_fallthru
      _
    %p791 = scmp.le.s32.totalorder 2, %s23
    // Predicated region
    $region45: #{dense_3d_dt_forward.1} parent=5 // pred_check
      %p792 = pneg %p791
    $region46: #{dense_3d_dt_forward.1} parent=5 // pred_check_branch
      %794 = sbr.rel (%p792) target = $region48
    $region47: #{dense_3d_dt_forward.1} parent=5 // pred_region
      %s795 = ssub.s32 %s23, 2
      // Predicated region
      $region49: #{dense_3d_dt_forward.1} parent=47 // pred_check
        %p796 = pneg %p157
      $region50: #{dense_3d_dt_forward.1} parent=47 // pred_check_branch
        %798 = sbr.rel (%p796) target = $region52
      $region51: #{dense_3d_dt_forward.1} parent=47 // pred_region
        %s799 = smul.u32 2, %s29
        %p800 = scmp.lt.s32.totalorder %s799, 3
        %s801 = scalar_select %p800, %s799, 3
        %s802 = smul.addr %s801, 16
        %s803 = smul.addr %s802, 8
        %s804 = scalar_lea.vmem %s7, %s803
      $region52: #{dense_3d_dt_forward.1} parent=47 // pred_fallthru
        _
    $region48: #{dense_3d_dt_forward.1} parent=5 // pred_fallthru
      _
  $region6: #{dense_3d_dt_forward.1} parent=0 // loop_footer
    %s27 = sadd.s32 1, %s23
  $region7: #{dense_3d_dt_forward.1} parent=0 // loop_footer_branch
    %22 = sbr.rel target = $region3
  $region8: #{dense_3d_dt_forward.1} parent=0 // loop_exit
    _

</llo_original>
